<compile_context>
chip_gen: v5e
topology: v5e:2x2
jax: 0.10.0
libtpu: 0.0.40
codegen_flags: <defaults>
</compile_context>

<pallas_src>
import functools

import jax
import jax.numpy as jnp
from jax.experimental import pallas as pl
from jax.experimental.pallas import tpu as pltpu

SMOOTH = 0.001
LAMD = 0.5
LABEL_SMOOTH = 0.001


def dice_ce_kernel(pred_ref, tgt_ref, out_ref, acc_ref, *,
                   num_classes, label_smoothing, tiles_per_p, tile_px,
                   total_px, needs_mask):
    """pred_ref: (C, TP) logits; tgt_ref: (1, TP) integer class ids.

    out_ref: (8, 128) per-(batch, chunk) partial sums (rows 0..3 used).
    acc_ref: (4, TP) f32 lane-vector accumulators:
      row 0: sum(pmax * target_id), row 1: sum(pmax),
      row 2: sum(target_id),        row 3: sum(per-pixel CE).
    """
    j = pl.program_id(2)

    @pl.when(j == 0)
    def _():
        acc_ref[...] = jnp.zeros_like(acc_ref)

    logits = pred_ref[...].astype(jnp.float32)              # (C, TP)
    tgt = tgt_ref[...].astype(jnp.int32)                     # (1, TP)
    tgt_f = tgt.astype(jnp.float32)

    # softmax pieces over the class (sublane) axis
    m = jnp.max(logits, axis=0, keepdims=True)               # (1, TP)
    e = jnp.exp(logits - m)                                    # (C, TP)
    s = jnp.sum(e, axis=0, keepdims=True)                      # (1, TP)
    # max_c softmax(x)_c = exp(0)/s = 1/s.  Approx reciprocal uses the (idle)
    # EUP slot; one Newton step restores ~1e-7 rel accuracy (<< 1e-5 tol).
    r = pl.reciprocal(s, approx=True)
    pmax = r * (2.0 - s * r)                                    # (1, TP)
    log_s = jnp.log(s)                                          # (1, TP)

    # label-smoothed cross entropy per pixel, without materializing log-probs:
    #   logp = logits - m - log_s
    #   ce = -(1-eps)*logp[target] - (eps/C)*sum_c logp
    #      = (m + log_s) - (1-eps)*logit_t - (eps/C)*sum_logits
    cls = jax.lax.broadcasted_iota(jnp.int32, logits.shape, 0)
    logit_t = jnp.sum(jnp.where(cls == tgt, logits, 0.0),
                      axis=0, keepdims=True)                    # (1, TP)
    sum_logits = jnp.sum(logits, axis=0, keepdims=True)         # (1, TP)

    eps = label_smoothing
    c = float(num_classes)
    ce = (m + log_s) - (1.0 - eps) * logit_t - (eps / c) * sum_logits  # (1, TP)

    if needs_mask:
        # mask lanes belonging to the (implicitly padded) tail of the pixel axis
        base = (pl.program_id(1) * tiles_per_p + j) * tile_px
        lane = jax.lax.broadcasted_iota(jnp.int32, (1, tile_px), 1)
        valid = (lane + base) < total_px
        pmax = jnp.where(valid, pmax, 0.0)
        tgt_f = jnp.where(valid, tgt_f, 0.0)
        ce = jnp.where(valid, ce, 0.0)

    # single (4, TP) read-modify-write on the accumulator (one vld/vadd/vst per
    # vreg-column instead of four masked row-slice RMWs)
    upd = jnp.concatenate([pmax * tgt_f, pmax, tgt_f, ce], axis=0)   # (4, TP)
    acc_ref[...] += upd

    # per-(batch, chunk) epilogue: one cross-lane reduction over (4, TP)
    @pl.when(j == pl.num_programs(2) - 1)
    def _():
        sums = jnp.sum(acc_ref[...], axis=1, keepdims=True)          # (4, 1)
        blk = jnp.concatenate([sums, jnp.zeros((4, 1), jnp.float32)], axis=0)
        out_ref[...] = jnp.broadcast_to(blk, out_ref.shape)


def _choose_tile(hw, num_classes, vmem_budget_bytes=8 << 20):
    """Largest lane-tile width that keeps ~10 live f32 (C, tp) slabs
    (double-buffered input + temps) under a conservative VMEM budget that fits
    the default scoped limit on v5e/v6e/v7x.  The partial last tile is handled
    by an in-kernel mask, so no divisibility of H*W is required."""
    per_pixel = 10 * num_classes * 4
    cap = max(512, min(32768, vmem_budget_bytes // per_pixel))
    if hw <= cap:
        return hw                       # full-extent block is always legal
    return (cap // 128) * 128           # lane-aligned; tail masked in-kernel


def dice_ce_loss_pallas(pred, target, *, smooth=SMOOTH, lamd=LAMD,
                        label_smoothing=LABEL_SMOOTH, tp=None):
    """pred: (N, C, H, W) float logits (f32 or bf16);
    target: (N, 1, H, W) integer class ids (any integer dtype; cast in-kernel)."""
    N, C, H, W = pred.shape
    HW = H * W
    if tp is None:
        tp = _choose_tile(HW, C)

    total_tiles = pl.cdiv(HW, tp)
    # Second "parallel" axis over pixel chunks so v7x's 2nd TensorCore is used
    # even when N is small.  Only split when it divides evenly (no OOB blocks).
    P = 2 if (total_tiles % 2 == 0 and total_tiles >= 2) else 1
    tiles_per_p = total_tiles // P
    needs_mask = (HW % tp) != 0

    # Free reshapes: native layout, no HBM->HBM transpose / dtype-cast pass.
    pred3 = pred.reshape(N, C, HW)
    tgt3 = target.reshape(N, 1, HW)

    kernel = functools.partial(
        dice_ce_kernel, num_classes=C, label_smoothing=label_smoothing,
        tiles_per_p=tiles_per_p, tile_px=tp, total_px=HW,
        needs_mask=needs_mask)

    # Explicit VMEM limit sized from the actual tile (robust on v5e's smaller
    # default scoped limit and v7x's 64 MiB physical VMEM).
    pred_bytes = jnp.dtype(pred.dtype).itemsize
    tgt_bytes = jnp.dtype(tgt3.dtype).itemsize
    est = (2 * C * tp * pred_bytes        # double-buffered logits block
           + 2 * tp * tgt_bytes           # double-buffered target block
           + 4 * tp * 4                   # accumulator scratch
           + 2 * 8 * 128 * 4              # output block
           + 12 * C * tp * 4              # f32 temporaries
           + (4 << 20))                   # headroom for compiler internals
    vmem_limit = int(min(56 << 20, max(16 << 20, est)))

    partials = pl.pallas_call(
        kernel,
        out_shape=jax.ShapeDtypeStruct((N, P, 8, 128), jnp.float32),
        grid=(N, P, tiles_per_p),
        in_specs=[
            pl.BlockSpec((pl.Squeezed(), C, tp),
                         lambda n, p, j: (n, 0, p * tiles_per_p + j)),
            pl.BlockSpec((pl.Squeezed(), 1, tp),
                         lambda n, p, j: (n, 0, p * tiles_per_p + j)),
        ],
        out_specs=pl.BlockSpec((pl.Squeezed(), pl.Squeezed(), 8, 128),
                               lambda n, p, j: (n, p, 0, 0)),
        scratch_shapes=[pltpu.VMEM((4, tp), jnp.float32)],
        compiler_params=pltpu.CompilerParams(
            dimension_semantics=("parallel", "parallel", "arbitrary"),
            vmem_limit_bytes=vmem_limit),
    )(pred3, tgt3)

    # Tiny scalar epilogue in the wrapper (keeps the parallel axes race-free).
    sums = jnp.sum(partials[:, :, :4, 0], axis=(0, 1))      # (4,)
    inter, psum, tsum, cesum = sums[0], sums[1], sums[2], sums[3]
    d = (2.0 * inter + smooth) / (psum + tsum + smooth)
    return lamd * (1.0 - d) + (1.0 - lamd) * (cesum / jnp.float32(N * HW))


def dice_ce_loss_ref(pred, target, *, smooth=SMOOTH, lamd=LAMD,
                     label_smoothing=LABEL_SMOOTH):
    """Pure-JAX reference matching the PyTorch forward semantics."""
    N, C, H, W = pred.shape
    t = target.reshape(N, H, W).astype(jnp.float32)
    t_idx = target.reshape(N, H, W).astype(jnp.int32)

    probs = jax.nn.softmax(pred, axis=1)
    pmax = jnp.max(probs, axis=1)
    d = (2.0 * jnp.sum(pmax * t) + smooth) / (jnp.sum(pmax) + jnp.sum(t) + smooth)

    logp = jax.nn.log_softmax(pred, axis=1)                       # (N, C, H, W)
    onehot = jax.nn.one_hot(t_idx, C, axis=1, dtype=jnp.float32)   # (N, C, H, W)
    eps = label_smoothing
    ce = (-(1.0 - eps) * jnp.sum(onehot * logp, axis=1)
          - (eps / C) * jnp.sum(logp, axis=1))                     # (N, H, W)
    return lamd * (1.0 - d) + (1.0 - lamd) * jnp.mean(ce)


if __name__ == "__main__":
    # Module has no learnable parameters; hyperparams smooth/lamd fixed above.
    key = jax.random.PRNGKey(0)
    k_pred, k_tgt = jax.random.split(key)

    N, C, H, W = 2, 4, 16, 16
    pred = jax.random.normal(k_pred, (N, C, H, W), dtype=jnp.float32)
    target = jax.random.randint(k_tgt, (N, 1, H, W), 0, C, dtype=jnp.int32)

    loss = jax.block_until_ready(dice_ce_loss_pallas(pred, target))
    ref = jax.block_until_ready(dice_ce_loss_ref(pred, target))
    assert jnp.allclose(loss, ref, atol=1e-5, rtol=1e-5), (loss, ref)

    # Exercise the masked partial-tile + dual-parallel-chunk path at small shape:
    # HW=400 with tp=128 -> 4 tiles (last one partial), P=2 parallel chunks.
    N2, C2, H2, W2 = 1, 6, 20, 20
    pred2 = jax.random.normal(jax.random.PRNGKey(1), (N2, C2, H2, W2),
                              dtype=jnp.float32)
    target2 = jax.random.randint(jax.random.PRNGKey(2), (N2, 1, H2, W2), 0, C2,
                                 dtype=jnp.int32)
    loss2 = jax.block_until_ready(dice_ce_loss_pallas(pred2, target2, tp=128))
    ref2 = jax.block_until_ready(dice_ce_loss_ref(pred2, target2))
    assert jnp.allclose(loss2, ref2, atol=1e-5, rtol=1e-5), (loss2, ref2)

    print("KERNEL_OK")
</pallas_src>

<mosaic_0001>
module attributes {stable_mosaic.version = 11 : i64} {
  func.func @dice_ce_kernel(%arg0: i32, %arg1: i32, %arg2: i32, %arg3: memref<1x4x256xf32, #tpu.memory_space<vmem>>, %arg4: memref<1x1x256xi32, #tpu.memory_space<vmem>>, %arg5: memref<1x1x8x128xf32, #tpu.memory_space<vmem>>, %arg6: memref<4x256xf32, #tpu.memory_space<vmem>>) attributes {dimension_semantics = [#tpu.dimension_semantics<parallel>, #tpu.dimension_semantics<parallel>, #tpu.dimension_semantics<arbitrary>], iteration_bounds = array<i64: 2, 1, 1>, scalar_prefetch = 0 : i64, scratch_operands = 1 : i64, tpu.core_type = #tpu.core_type<tc>, window_params = [{transform_indices = @transform_0, window_bounds = array<i64: 1, 4, 256>}, {transform_indices = @transform_1, window_bounds = array<i64: 1, 1, 256>}, {transform_indices = @transform_2, window_bounds = array<i64: 1, 1, 8, 128>}]} {
    %c0_i32 = arith.constant 0 : i32
    %0 = arith.cmpi eq, %arg2, %c0_i32 : i32
    %1 = arith.extui %0 : i1 to i32
    %c0_i32_0 = arith.constant 0 : i32
    %2 = arith.cmpi ne, %1, %c0_i32_0 : i32
    scf.if %2 {
      %cst_19 = arith.constant 0.000000e+00 : f32
      %45 = vector.broadcast %cst_19 : f32 to vector<4x256xf32>
      %c0_20 = arith.constant 0 : index
      %c0_21 = arith.constant 0 : index
      %46 = vector.load %arg6[%c0_20, %c0_21] : memref<4x256xf32, #tpu.memory_space<vmem>>, vector<4x256xf32>
      tpu.vector_store %arg6[%c0_20, %c0_21], %45 {strides = array<i32>} : memref<4x256xf32, #tpu.memory_space<vmem>>, vector<4x256xf32>,
    } else {
    }
    %c0 = arith.constant 0 : index
    %c0_1 = arith.constant 0 : index
    %c0_2 = arith.constant 0 : index
    %3 = vector.load %arg3[%c0, %c0_1, %c0_2] : memref<1x4x256xf32, #tpu.memory_space<vmem>>, vector<1x4x256xf32>
    %4 = vector.shape_cast %3 : vector<1x4x256xf32> to vector<4x256xf32>
    %c0_3 = arith.constant 0 : index
    %c0_4 = arith.constant 0 : index
    %c0_5 = arith.constant 0 : index
    %5 = vector.load %arg4[%c0_3, %c0_4, %c0_5] : memref<1x1x256xi32, #tpu.memory_space<vmem>>, vector<1x1x256xi32>
    %6 = vector.shape_cast %5 : vector<1x1x256xi32> to vector<1x256xi32>
    %7 = arith.sitofp %6 : vector<1x256xi32> to vector<1x256xf32>
    %cst = arith.constant dense<0xFF800000> : vector<256xf32>
    %8 = vector.multi_reduction <maximumf>, %4, %cst [0] : vector<4x256xf32> to vector<256xf32>
    %9 = vector.shape_cast %8 : vector<256xf32> to vector<1x256xf32>
    %10 = vector.broadcast %9 : vector<1x256xf32> to vector<4x256xf32>
    %11 = arith.subf %4, %10 : vector<4x256xf32>
    %12 = math.exp %11 : vector<4x256xf32>
    %cst_6 = arith.constant dense<0.000000e+00> : vector<256xf32>
    %13 = vector.multi_reduction <add>, %12, %cst_6 [0] : vector<4x256xf32> to vector<256xf32>
    %14 = vector.shape_cast %13 : vector<256xf32> to vector<1x256xf32>
    %15 = tpu.reciprocal %14 {approx = true} : vector<1x256xf32> -> vector<1x256xf32>
    %16 = arith.mulf %14, %15 : vector<1x256xf32>
    %cst_7 = arith.constant 2.000000e+00 : f32
    %17 = vector.broadcast %cst_7 : f32 to vector<1x256xf32>
    %18 = arith.subf %17, %16 : vector<1x256xf32>
    %19 = arith.mulf %15, %18 : vector<1x256xf32>
    %20 = math.log %14 : vector<1x256xf32>
    %21 = tpu.iota {dimensions = array<i32: 0>} : vector<4x256xi32>
    %22 = vector.broadcast %6 : vector<1x256xi32> to vector<4x256xi32>
    %23 = arith.cmpi eq, %21, %22 : vector<4x256xi32>
    %cst_8 = arith.constant 0.000000e+00 : f32
    %24 = vector.broadcast %cst_8 : f32 to vector<4x256xf32>
    %25 = arith.select %23, %4, %24 : vector<4x256xi1>, vector<4x256xf32>
    %cst_9 = arith.constant dense<0.000000e+00> : vector<256xf32>
    %26 = vector.multi_reduction <add>, %25, %cst_9 [0] : vector<4x256xf32> to vector<256xf32>
    %27 = vector.shape_cast %26 : vector<256xf32> to vector<1x256xf32>
    %cst_10 = arith.constant dense<0.000000e+00> : vector<256xf32>
    %28 = vector.multi_reduction <add>, %4, %cst_10 [0] : vector<4x256xf32> to vector<256xf32>
    %29 = vector.shape_cast %28 : vector<256xf32> to vector<1x256xf32>
    %30 = arith.addf %9, %20 : vector<1x256xf32>
    %cst_11 = arith.constant 9.990000e-01 : f32
    %31 = vector.broadcast %cst_11 : f32 to vector<1x256xf32>
    %32 = arith.mulf %31, %27 : vector<1x256xf32>
    %33 = arith.subf %30, %32 : vector<1x256xf32>
    %cst_12 = arith.constant 2.500000e-04 : f32
    %34 = vector.broadcast %cst_12 : f32 to vector<1x256xf32>
    %35 = arith.mulf %34, %29 : vector<1x256xf32>
    %36 = arith.subf %33, %35 : vector<1x256xf32>
    %37 = arith.mulf %19, %7 : vector<1x256xf32>
    %38 = tpu.concatenate %37, %19, %7, %36 in 0 : vector<1x256xf32>, vector<1x256xf32>, vector<1x256xf32>, vector<1x256xf32> -> vector<4x256xf32>
    %c0_13 = arith.constant 0 : index
    %c0_14 = arith.constant 0 : index
    %39 = vector.load %arg6[%c0_13, %c0_14] : memref<4x256xf32, #tpu.memory_space<vmem>>, vector<4x256xf32>
    %40 = arith.addf %39, %38 : vector<4x256xf32>
    %c0_15 = arith.constant 0 : index
    %c0_16 = arith.constant 0 : index
    %41 = vector.load %arg6[%c0_15, %c0_16] : memref<4x256xf32, #tpu.memory_space<vmem>>, vector<4x256xf32>
    tpu.vector_store %arg6[%c0_15, %c0_16], %40 {strides = array<i32>} : memref<4x256xf32, #tpu.memory_space<vmem>>, vector<4x256xf32>,
    %c0_i32_17 = arith.constant 0 : i32
    %42 = arith.cmpi eq, %arg2, %c0_i32_17 : i32
    %43 = arith.extui %42 : i1 to i32
    %c0_i32_18 = arith.constant 0 : i32
    %44 = arith.cmpi ne, %43, %c0_i32_18 : i32
    scf.if %44 {
      %c0_19 = arith.constant 0 : index
      %c0_20 = arith.constant 0 : index
      %45 = vector.load %arg6[%c0_19, %c0_20] : memref<4x256xf32, #tpu.memory_space<vmem>>, vector<4x256xf32>
      %cst_21 = arith.constant dense<0.000000e+00> : vector<4xf32>
      %46 = vector.multi_reduction <add>, %45, %cst_21 [1] : vector<4x256xf32> to vector<4xf32>
      %47 = vector.shape_cast %46 : vector<4xf32> to vector<4x1xf32>
      %cst_22 = arith.constant 0.000000e+00 : f32
      %48 = vector.broadcast %cst_22 : f32 to vector<4x1xf32>
      %49 = tpu.concatenate %47, %48 in 0 : vector<4x1xf32>, vector<4x1xf32> -> vector<8x1xf32>
      %50 = vector.shape_cast %49 : vector<8x1xf32> to vector<8x1xf32>
      %51 = vector.broadcast %50 : vector<8x1xf32> to vector<8x128xf32>
      %c0_23 = arith.constant 0 : index
      %c0_24 = arith.constant 0 : index
      %c0_25 = arith.constant 0 : index
      %c0_26 = arith.constant 0 : index
      %52 = vector.load %arg5[%c0_23, %c0_24, %c0_25, %c0_26] : memref<1x1x8x128xf32, #tpu.memory_space<vmem>>, vector<1x1x8x128xf32>
      %53 = vector.shape_cast %52 : vector<1x1x8x128xf32> to vector<8x128xf32>
      %54 = vector.shape_cast %51 : vector<8x128xf32> to vector<1x1x8x128xf32>
      tpu.vector_store %arg5[%c0_23, %c0_24, %c0_25, %c0_26], %54 {strides = array<i32>} : memref<1x1x8x128xf32, #tpu.memory_space<vmem>>, vector<1x1x8x128xf32>,
    } else {
    }
    return
  }
  func.func @transform_0(%arg0: i32, %arg1: i32, %arg2: i32) -> (i32, i32, i32) {
    %c1_i32 = arith.constant 1 : i32
    %0 = arith.muli %arg1, %c1_i32 : i32
    %1 = arith.addi %0, %arg2 : i32
    %c0_i32 = arith.constant 0 : i32
    %c0_i32_0 = arith.constant 0 : i32
    return %arg0, %c0_i32, %1 : i32, i32, i32
  }
  func.func @transform_1(%arg0: i32, %arg1: i32, %arg2: i32) -> (i32, i32, i32) {
    %c1_i32 = arith.constant 1 : i32
    %0 = arith.muli %arg1, %c1_i32 : i32
    %1 = arith.addi %0, %arg2 : i32
    %c0_i32 = arith.constant 0 : i32
    %c0_i32_0 = arith.constant 0 : i32
    return %arg0, %c0_i32, %1 : i32, i32, i32
  }
  func.func @transform_2(%arg0: i32, %arg1: i32, %arg2: i32) -> (i32, i32, i32, i32) {
    %c0_i32 = arith.constant 0 : i32
    %c0_i32_0 = arith.constant 0 : i32
    %c0_i32_1 = arith.constant 0 : i32
    return %arg0, %arg1, %c0_i32, %c0_i32_0 : i32, i32, i32, i32
  }
}

</mosaic_0001>

<llo_original>
// kernel: tpu_custom_call.1
$region0: #{tpu_custom_call.1}
  #allocation0 [shape = 'u32[]', space=smem, size = 0x4, offset = 0x4, fixed_abs, tag = 'smem constant byte address 0x4 - core index']
  #allocation1 [shape = 'u32[72,128]{1,0:T(1,128)}', space=vmem, size = 0x9000, scoped, tag = 'internal scratch']
  #allocation2 [shape = 'f32[4,256]{1,0:T(4,128)}', space=vmem, size = 0x1000, scoped, tag = 'scratch operand']
  %s0 = inlined_call_operand.hbm [shape: f32[2,4,256], index: 0, kind: input, shape index: {}]
  %s1 = inlined_call_operand.hbm [shape: s32[2,1,256], index: 1, kind: input, shape index: {}]
  %s2 = inlined_call_operand.hbm [shape: f32[2,1,8,128], index: 2, kind: output, shape index: {}]
  %s3 = sld [smem:[#allocation0]]
  $region57: #{tpu_custom_call.1} parent=0
    _
  %s5 = ssub.s32 1, %s3
  %s6 = scalar_select 0, %s5, %s3
  $region1: #{tpu_custom_call.1} parent=0
    #allocation3 [shape = 'u8[8192]{0}', space=vmem, size = 0x2000, scoped, tag = 'input window, operand 0']
    #allocation4 [shape = 's32[2]{0}', space=sflag, size = 0x8, scoped, tag = 'scoped memory for tpu_custom_call.1']
    #allocation5 [shape = 's32[2]{0}', space=sflag, size = 0x8, scoped, tag = 'scoped memory for tpu_custom_call.1']
    #allocation6 [shape = 'u8[2048]{0}', space=vmem, size = 0x800, scoped, tag = 'input window, operand 1']
    #allocation7 [shape = 's32[2]{0}', space=sflag, size = 0x8, scoped, tag = 'scoped memory for tpu_custom_call.1']
    #allocation8 [shape = 'u8[8192]{0}', space=vmem, size = 0x2000, scoped, tag = 'output window, operand 0']
    %7 = vsyncpa [#allocation4], 0
    %s8 = scalar_lea.sflag [#allocation4], 1
    %9 = vsyncpa %s8, 0
    %10 = vsyncpa [#allocation7], 0
    %s11 = scalar_lea.sflag [#allocation7], 1
    %12 = vsyncpa %s11, 0
    %13 = vsyncpa [#allocation5], 0
    %s14 = scalar_lea.sflag [#allocation5], 1
    %15 = vsyncpa %s14, 0
    loop: start=0, step=1, limit=4
    $region2: #{tpu_custom_call.1} parent=1 // loop_pre_header
      _
    $region3: #{tpu_custom_call.1} parent=1 // loop_header
      %s17 = sphi 0, %s21
      %p18 = scmp.ge.s32.totalorder %s17, 4
      %s24 = sphi 0, %s43
      %s25 = sphi 0, %s39
      %s26 = sphi 0, %s35
      %s27 = sphi 0, %s24
      %s28 = sphi 0, %s25
      %s29 = sphi 0, %s26
      %s30 = sphi 0, %s27
      %s31 = sphi 0, %s28
      %s32 = sphi 0, %s29
      %s50 = sphi 0, %s52
      %s53 = sphi 0, %s50
      %s54 = sphi 0, %s53
      %s70 = sphi 0, %s54
      %s80 = sphi 0, %s82
      %s83 = sphi 0, %s80
      %s84 = sphi 0, %s83
      %s100 = sphi 0, %s84
      %s108 = sphi 0, %s110
      %s111 = sphi 0, %s108
      %s112 = sphi 0, %s111
      %s128 = sphi 0, %s112
    $region4: #{tpu_custom_call.1} parent=1 // loop_header_branch
      %20 = sbr.rel (%p18) target = $region8
    $region5: #{tpu_custom_call.1} parent=1 // loop_body
      %s22 = ssub.s32 %s17, 1
      %s23 = ssub.s32 %s17, 2
      %s33 = sadd.s32 1, %s26
      %p34 = scmp.ge.s32.totalorder %s33, 1
      %s35 = scalar_select %p34, 0, %s33
      %s36 = sadd.s32 1, %s25
      %s37 = scalar_select %p34, %s36, %s25
      %p38 = scmp.ge.s32.totalorder %s37, 1
      %s39 = scalar_select %p38, 0, %s37
      %s40 = sadd.s32 1, %s24
      %s41 = scalar_select %p38, %s40, %s24
      %p42 = scmp.ge.s32.totalorder %s41, 2
      %s43 = scalar_select %p42, 0, %s41
      %s44 = sadd.s32 %s25, %s26
      %s45 = sadd.s32 %s39, %s35
      %s46 = ssub.s32 %s24, %s43
      %s47 = ssub.s32 %s44, %s45
      %s48 = sor.u32 %s46, %s47
      %p49 = scmp.eq.s32.totalorder %s48, 0
      %s51 = sadd.s32 %s50, 1
      %s52 = scalar_select %p49, %s50, %s51
      %p55 = pneg %p49
      %p56 = scmp.eq.s32.totalorder %s17, 1
      %p57 = por %p55, %p56
      %p58 = scmp.ne.s32.totalorder %s50, %s53
      %p59 = scmp.eq.s32.totalorder %s17, 0
      %p60 = por %p58, %p59
      %p61 = scmp.ne.s32.totalorder %s50, %s53
      %p62 = scmp.eq.s32.totalorder %s22, 1
      %p63 = por %p61, %p62
      %p64 = scmp.ne.s32.totalorder %s53, %s54
      %p65 = scmp.eq.s32.totalorder %s22, 0
      %p66 = por %p64, %p65
      %p67 = scmp.ne.s32.totalorder %s53, %s54
      %p68 = scmp.eq.s32.totalorder %s23, 1
      %p69 = por %p67, %p68
      %p71 = scmp.ne.s32.totalorder %s54, %s70
      %p72 = scmp.eq.s32.totalorder %s23, 0
      %p73 = por %p71, %p72
      %s74 = sadd.s32 %s25, %s26
      %s75 = sadd.s32 %s39, %s35
      %s76 = ssub.s32 %s24, %s43
      %s77 = ssub.s32 %s74, %s75
      %s78 = sor.u32 %s76, %s77
      %p79 = scmp.eq.s32.totalorder %s78, 0
      %s81 = sadd.s32 %s80, 1
      %s82 = scalar_select %p79, %s80, %s81
      %p85 = pneg %p79
      %p86 = scmp.eq.s32.totalorder %s17, 1
      %p87 = por %p85, %p86
      %p88 = scmp.ne.s32.totalorder %s80, %s83
      %p89 = scmp.eq.s32.totalorder %s17, 0
      %p90 = por %p88, %p89
      %p91 = scmp.ne.s32.totalorder %s80, %s83
      %p92 = scmp.eq.s32.totalorder %s22, 1
      %p93 = por %p91, %p92
      %p94 = scmp.ne.s32.totalorder %s83, %s84
      %p95 = scmp.eq.s32.totalorder %s22, 0
      %p96 = por %p94, %p95
      %p97 = scmp.ne.s32.totalorder %s83, %s84
      %p98 = scmp.eq.s32.totalorder %s23, 1
      %p99 = por %p97, %p98
      %p101 = scmp.ne.s32.totalorder %s84, %s100
      %p102 = scmp.eq.s32.totalorder %s23, 0
      %p103 = por %p101, %p102
      %s104 = ssub.s32 %s24, %s43
      %s105 = ssub.s32 %s25, %s39
      %s106 = sor.u32 %s104, %s105
      %p107 = scmp.eq.s32.totalorder %s106, 0
      %s109 = sadd.s32 %s108, 1
      %s110 = scalar_select %p107, %s108, %s109
      %p113 = pneg %p107
      %p114 = scmp.eq.s32.totalorder %s17, 1
      %p115 = por %p113, %p114
      %p116 = scmp.ne.s32.totalorder %s108, %s111
      %p117 = scmp.eq.s32.totalorder %s17, 0
      %p118 = por %p116, %p117
      %p119 = scmp.ne.s32.totalorder %s108, %s111
      %p120 = scmp.eq.s32.totalorder %s22, 1
      %p121 = por %p119, %p120
      %p122 = scmp.ne.s32.totalorder %s111, %s112
      %p123 = scmp.eq.s32.totalorder %s22, 0
      %p124 = por %p122, %p123
      %p125 = scmp.ne.s32.totalorder %s111, %s112
      %p126 = scmp.eq.s32.totalorder %s23, 1
      %p127 = por %p125, %p126
      %p129 = scmp.ne.s32.totalorder %s112, %s128
      %p130 = scmp.eq.s32.totalorder %s23, 0
      %p131 = por %p129, %p130
      %p132 = scmp.le.s32.totalorder 1, %s17
      %p133 = scmp.lt.s32.totalorder %s17, 3
      %p134 = pnand %p132, %p133
      %p135 = pneg %p134
      // Predicated region
      $region9: #{tpu_custom_call.1} parent=5 // pred_check
        _
      $region10: #{tpu_custom_call.1} parent=5 // pred_check_branch
        %137 = sbr.rel (%p134) target = $region12
      $region11: #{tpu_custom_call.1} parent=5 // pred_region
        %s138 = ssub.s32 %s17, 1
      $region12: #{tpu_custom_call.1} parent=5 // pred_fallthru
        _
      %p139 = scmp.lt.s32.totalorder %s17, 2
      // Predicated region
      $region13: #{tpu_custom_call.1} parent=5 // pred_check
        %p140 = pneg %p139
      $region14: #{tpu_custom_call.1} parent=5 // pred_check_branch
        %142 = sbr.rel (%p140) target = $region16
      $region15: #{tpu_custom_call.1} parent=5 // pred_region
        // Predicated region
        $region17: #{tpu_custom_call.1} parent=15 // pred_check
          %p143 = pneg %p60
        $region18: #{tpu_custom_call.1} parent=15 // pred_check_branch
          %145 = sbr.rel (%p143) target = $region20
        $region19: #{tpu_custom_call.1} parent=15 // pred_region
          %s146 = sand.u32 %s50, 1
          %s147 = scalar_lea.sflag [#allocation4], %s146
          %s148 = sand.u32 %s50, 1
          %s149 = smul.addr %s148, 8
          %s150 = scalar_lea.vmem [#allocation3], %s149
          %s151 = sadd.s32 %s25, %s26
          %s152 = smul.u32 2, %s151
          %154 = vsyncadd %s147, 0
          %s155 = smul.addr %s24, 2
          %s156 = sadd.s32 %s152, %s155
          %s157 = smul.addr %s156, 4
          %s158 = scalar_lea.hbm %s0, %s157
          %s160 = sshll.u32 %s158, 4
          %s161 = int_to_ptr.hbm [resolvable:$true] %s160
          %s162 = sshll.u32 %s150, 4
          %s163 = int_to_ptr.vmem [resolvable:$true] %s162
          %165 = dma.hbm_to_vmem [thread:$0]  %s161, 128, %s163, %s147
        $region20: #{tpu_custom_call.1} parent=15 // pred_fallthru
          _
        // Predicated region
        $region21: #{tpu_custom_call.1} parent=15 // pred_check
          %p166 = pneg %p90
        $region22: #{tpu_custom_call.1} parent=15 // pred_check_branch
          %168 = sbr.rel (%p166) target = $region24
        $region23: #{tpu_custom_call.1} parent=15 // pred_region
          %s169 = sand.u32 %s80, 1
          %s170 = scalar_lea.sflag [#allocation7], %s169
          %s171 = sand.u32 %s80, 1
          %s172 = smul.addr %s171, 2
          %s173 = scalar_lea.vmem [#allocation6], %s172
          %s174 = sadd.s32 %s25, %s26
          %s175 = smul.u32 2, %s174
          %177 = vsyncadd %s170, 0
          %s178 = smul.addr %s24, 2
          %s179 = sadd.s32 %s175, %s178
          %s180 = scalar_lea.hbm %s1, %s179
          %s182 = sshll.u32 %s180, 4
          %s183 = int_to_ptr.hbm [resolvable:$true] %s182
          %s184 = sshll.u32 %s173, 4
          %s185 = int_to_ptr.vmem [resolvable:$true] %s184
          %187 = dma.hbm_to_vmem [thread:$0]  %s183, 32, %s185, %s170
        $region24: #{tpu_custom_call.1} parent=15 // pred_fallthru
          _
      $region16: #{tpu_custom_call.1} parent=5 // pred_fallthru
        _
      %p188 = scmp.le.s32.totalorder 1, %s17
      %p189 = scmp.lt.s32.totalorder %s17, 3
      %p190 = pnand %p188, %p189
      %p191 = pneg %p190
      // Predicated region
      $region25: #{tpu_custom_call.1} parent=5 // pred_check
        _
      $region26: #{tpu_custom_call.1} parent=5 // pred_check_branch
        %193 = sbr.rel (%p190) target = $region28
      $region27: #{tpu_custom_call.1} parent=5 // pred_region
        %s194 = ssub.s32 %s17, 1
        %s195 = sand.u32 %s53, 1
        %s196 = scalar_lea.sflag [#allocation4], %s195
        %s197 = sand.u32 %s53, 1
        %s198 = smul.addr %s197, 8
        %s199 = scalar_lea.vmem [#allocation3], %s198
        // Predicated region
        $region29: #{tpu_custom_call.1} parent=27 // pred_check
          %p200 = pneg %p66
        $region30: #{tpu_custom_call.1} parent=27 // pred_check_branch
          %202 = sbr.rel (%p200) target = $region32
        $region31: #{tpu_custom_call.1} parent=27 // pred_region
          %204 = dma.done %s196, 128
        $region32: #{tpu_custom_call.1} parent=27 // pred_fallthru
          _
        %s205 = sand.u32 %s83, 1
        %s206 = scalar_lea.sflag [#allocation7], %s205
        %s207 = sand.u32 %s83, 1
        %s208 = smul.addr %s207, 2
        %s209 = scalar_lea.vmem [#allocation6], %s208
        // Predicated region
        $region33: #{tpu_custom_call.1} parent=27 // pred_check
          %p210 = pneg %p96
        $region34: #{tpu_custom_call.1} parent=27 // pred_check_branch
          %212 = sbr.rel (%p210) target = $region36
        $region35: #{tpu_custom_call.1} parent=27 // pred_region
          %214 = dma.done %s206, 32
        $region36: #{tpu_custom_call.1} parent=27 // pred_fallthru
          _
        %s215 = sand.u32 %s53, 1
        %s216 = scalar_lea.sflag [#allocation4], %s215
        %s217 = sand.u32 %s53, 1
        %s218 = smul.addr %s217, 8
        %s219 = scalar_lea.vmem [#allocation3], %s218
        %p220 = pneg %p66
        %p221 = pneg %p63
        %s222 = sand.u32 %s83, 1
        %s223 = scalar_lea.sflag [#allocation7], %s222
        %s224 = sand.u32 %s83, 1
        %s225 = smul.addr %s224, 2
        %s226 = scalar_lea.vmem [#allocation6], %s225
        %p227 = pneg %p96
        %p228 = pneg %p93
        %p229 = pneg %p124
        %p230 = pneg %p121
        %s231 = sand.u32 %s111, 1
        %s232 = scalar_lea.sflag [#allocation5], %s231
        %s233 = sand.u32 %s111, 1
        %s234 = smul.addr %s233, 8
        %s235 = scalar_lea.vmem [#allocation8], %s234
        %s236 = sadd.s32 %s28, %s29
        %s237 = smul.u32 2, %s236
        %s238 = sadd.s32 %s28, %s29
        %s239 = smul.u32 2, %s238
        %p240 = scmp.eq.s32.totalorder %s29, 0
        // Predicated region
        $region37: #{tpu_custom_call.1} parent=27 // pred_check
          %p241 = pneg %p240
        $region38: #{tpu_custom_call.1} parent=27 // pred_check_branch
          %243 = sbr.rel (%p241) target = $region40
        $region39: #{tpu_custom_call.1} parent=27 // pred_region
          %244 = vst [vmem:[#allocation2] sm:$0xff] 0.0
        $region40: #{tpu_custom_call.1} parent=27 // pred_fallthru
          _
        %v245 = vld [vmem:[%s199] sm:$0xff]
        %v246 = vld [vmem:[%s209] sm:$0x3]
        %v247 = vcvt.s32.f32 %v246
        %249 = vst [vmem:[#allocation1] ss:$2 sm:$0xff] %v245
        %v250 = vld.sshfl [vmem:[#allocation1] sm:$0xff pattern:$0x75316420]
        %v251 = vld.sshfl [vmem:[#allocation1 + $0x8] sm:$0xff pattern:$0x75316420]
        %vm254 = vcmask 1043456
        %v255 = vsel %vm254, %v250, -inf
        %v256 = vrot.slane %v255, 4
        %v257 = vmax.f32 %v255, %v256
        %v258 = vrot.slane %v257, 2
        %v259 = vmax.f32 %v257, %v258
        %v260 = vrot.slane %v259, 1
        %v261 = vmax.f32 %v259, %v260
        %v262 = vsel %vm254, %v251, -inf
        %v263 = vrot.slane %v262, 4
        %v264 = vmax.f32 %v262, %v263
        %v265 = vrot.slane %v264, 2
        %v266 = vmax.f32 %v264, %v265
        %v267 = vrot.slane %v266, 1
        %v268 = vmax.f32 %v266, %v267
        %v271 = vrot.slane %v268, 4
        %v272 = vsel %vm254, %v261, %v271
        %v274 = vsub.f32 %v245, %v272
        %v275 = vmul.f32 %v274, 1.442695
        %v276 = vpow.pop %v275
        %278 = vst [vmem:[#allocation1] ss:$2 sm:$0xff] %v276
        %v279 = vld.sshfl [vmem:[#allocation1] sm:$0xff pattern:$0x75316420]
        %v280 = vld.sshfl [vmem:[#allocation1 + $0x8] sm:$0xff pattern:$0x75316420]
        %v283 = vsel %vm254, %v279, 0.0
        %v284 = vrot.slane %v283, 4
        %v285 = vadd.f32 %v283, %v284
        %v286 = vrot.slane %v285, 2
        %v287 = vadd.f32 %v285, %v286
        %v288 = vrot.slane %v287, 1
        %v289 = vadd.f32 %v287, %v288
        %v290 = vsel %vm254, %v280, 0.0
        %v291 = vrot.slane %v290, 4
        %v292 = vadd.f32 %v290, %v291
        %v293 = vrot.slane %v292, 2
        %v294 = vadd.f32 %v292, %v293
        %v295 = vrot.slane %v294, 1
        %v296 = vadd.f32 %v294, %v295
        %v297 = vrcp.pop %v289
        %v298 = vrcp.pop %v296
        %v299 = vmul.f32 %v289, %v297
        %v300 = vmul.f32 %v296, %v298
        %v301 = vsub.f32 2.0, %v299
        %v302 = vsub.f32 2.0, %v300
        %v303 = vmul.f32 %v297, %v301
        %v304 = vmul.f32 %v298, %v302
        %v305 = vlog2.pop %v289
        %v306 = vmul.f32 %v305, 0.6931472
        %v307 = vlog2.pop %v296
        %v308 = vmul.f32 %v307, 0.6931472
        %v309 = vlaneseq
        %v310 = vshrl.u32 %v309, 7
        %v311 = vperm.slane %v246, 0
        %v312 = vperm.slane %v246, 1
        %vm313 = vcmp.eq.s32.totalorder %v310, %v311
        %vm314 = vcmp.eq.s32.totalorder %v310, %v312
        %315 = vst [vmem:[#allocation1] ss:$2 sm:$0xff] %v245
        %v316 = vld.sshfl [vmem:[#allocation1] sm:$0xff pattern:$0x75316420]
        %v317 = vld.sshfl [vmem:[#allocation1 + $0x8] sm:$0xff pattern:$0x75316420]
        %v320 = vsel %vm313, %v316, 0.0
        %v321 = vsel %vm314, %v317, 0.0
        %v322 = vsel %vm254, %v320, 0.0
        %v323 = vrot.slane %v322, 4
        %v324 = vadd.f32 %v322, %v323
        %v325 = vrot.slane %v324, 2
        %v326 = vadd.f32 %v324, %v325
        %v327 = vrot.slane %v326, 1
        %v328 = vadd.f32 %v326, %v327
        %v329 = vsel %vm254, %v321, 0.0
        %v330 = vrot.slane %v329, 4
        %v331 = vadd.f32 %v329, %v330
        %v332 = vrot.slane %v331, 2
        %v333 = vadd.f32 %v331, %v332
        %v334 = vrot.slane %v333, 1
        %v335 = vadd.f32 %v333, %v334
        %336 = vst [vmem:[#allocation1] ss:$2 sm:$0xff] %v245
        %v337 = vld.sshfl [vmem:[#allocation1] sm:$0xff pattern:$0x75316420]
        %v338 = vld.sshfl [vmem:[#allocation1 + $0x8] sm:$0xff pattern:$0x75316420]
        %v341 = vsel %vm254, %v337, 0.0
        %v342 = vrot.slane %v341, 4
        %v343 = vadd.f32 %v341, %v342
        %v344 = vrot.slane %v343, 2
        %v345 = vadd.f32 %v343, %v344
        %v346 = vrot.slane %v345, 1
        %v347 = vadd.f32 %v345, %v346
        %v348 = vsel %vm254, %v338, 0.0
        %v349 = vrot.slane %v348, 4
        %v350 = vadd.f32 %v348, %v349
        %v351 = vrot.slane %v350, 2
        %v352 = vadd.f32 %v350, %v351
        %v353 = vrot.slane %v352, 1
        %v354 = vadd.f32 %v352, %v353
        %v355 = vadd.f32 %v261, %v306
        %v356 = vadd.f32 %v268, %v308
        %v357 = vmul.f32 %v328, 0.999
        %v358 = vmul.f32 %v335, 0.999
        %v359 = vsub.f32 %v355, %v357
        %v360 = vsub.f32 %v356, %v358
        %v361 = vmul.f32 %v347, 0.00025
        %v362 = vmul.f32 %v354, 0.00025
        %v363 = vsub.f32 %v359, %v361
        %v364 = vsub.f32 %v360, %v362
        %v366 = vperm.slane %v247, 0
        %v367 = vperm.slane %v247, 1
        %v370 = vmul.f32 %v303, %v366
        %v371 = vmul.f32 %v304, %v367
        %vm372 = vcmask 1040384
        %v373 = vsel %vm372, %v370, %v303
        %v374 = vsel %vm372, %v371, %v304
        %vm375 = vcmask 1041408
        %v376 = vsel %vm375, %v373, %v366
        %v377 = vsel %vm375, %v374, %v367
        %vm378 = vcmask 1042432
        %v379 = vsel %vm378, %v376, %v363
        %v380 = vsel %vm378, %v377, %v364
        %v381 = vld [vmem:[#allocation2] sm:$0xff]
        %v384 = vrot.slane %v380, 4
        %v385 = vsel %vm254, %v379, %v384
        %v387 = vadd.f32 %v381, %v385
        %388 = vst [vmem:[#allocation2] sm:$0xff] %v387
        // Predicated region
        $region41: #{tpu_custom_call.1} parent=27 // pred_check
          %p389 = pneg %p240
        $region42: #{tpu_custom_call.1} parent=27 // pred_check_branch
          %391 = sbr.rel (%p389) target = $region44
        $region43: #{tpu_custom_call.1} parent=27 // pred_region
          %v392 = vld [vmem:[#allocation2] sm:$0xff]
          %394 = vst [vmem:[#allocation1] ss:$2 sm:$0xff] %v392
          %v395 = vld.sshfl [vmem:[#allocation1] sm:$0xff pattern:$0x75316420]
          %v396 = vld.sshfl [vmem:[#allocation1 + $0x8] sm:$0xff pattern:$0x75316420]
          %v399 = vsel %vm254, %v395, 0.0
          %v400 = vsel %vm254, %v396, 0.0
          %v401 = vadd.f32 %v399, %v400
          %402 = vadd.xlane.f32.xlu0 %v401
          %v403 = vpop.xlane.xlu0 %402
          %v404 = vsel %vm254, %v403, 0.0
          %406 = vset.pattern.permute.xlu0 0
          %407 = vperm.xlu0 %406, %v404
          %v408 = vpop.permute.xlu0 %407
          %410 = vst [vmem:[%s235] sm:$0xff] %v408
        $region44: #{tpu_custom_call.1} parent=27 // pred_fallthru
          _
        %s411 = sand.u32 %s111, 1
        %s412 = scalar_lea.sflag [#allocation5], %s411
        %s413 = sand.u32 %s111, 1
        %s414 = smul.addr %s413, 8
        %s415 = scalar_lea.vmem [#allocation8], %s414
        // Predicated region
        $region45: #{tpu_custom_call.1} parent=27 // pred_check
          %p416 = pneg %p121
        $region46: #{tpu_custom_call.1} parent=27 // pred_check_branch
          %418 = sbr.rel (%p416) target = $region48
        $region47: #{tpu_custom_call.1} parent=27 // pred_region
          %420 = vsyncadd %s412, 0
          %s421 = sadd.s32 %s28, %s27
          %s422 = smul.addr %s421, 8
          %s423 = scalar_lea.hbm %s2, %s422
          %s425 = sshll.u32 %s415, 4
          %s426 = int_to_ptr.vmem [resolvable:$true] %s425
          %s427 = sshll.u32 %s423, 4
          %s428 = int_to_ptr.hbm [resolvable:$true] %s427
          %430 = dma.vmem_to_hbm [thread:$0]  %s426, 128, %s428, %s412
        $region48: #{tpu_custom_call.1} parent=27 // pred_fallthru
          _
      $region28: #{tpu_custom_call.1} parent=5 // pred_fallthru
        _
      %p431 = scmp.le.s32.totalorder 2, %s17
      // Predicated region
      $region49: #{tpu_custom_call.1} parent=5 // pred_check
        %p432 = pneg %p431
      $region50: #{tpu_custom_call.1} parent=5 // pred_check_branch
        %434 = sbr.rel (%p432) target = $region52
      $region51: #{tpu_custom_call.1} parent=5 // pred_region
        %s435 = ssub.s32 %s17, 2
        // Predicated region
        $region53: #{tpu_custom_call.1} parent=51 // pred_check
          %p436 = pneg %p127
        $region54: #{tpu_custom_call.1} parent=51 // pred_check_branch
          %438 = sbr.rel (%p436) target = $region56
        $region55: #{tpu_custom_call.1} parent=51 // pred_region
          %s439 = sand.u32 %s112, 1
          %s440 = scalar_lea.sflag [#allocation5], %s439
          %s441 = sand.u32 %s112, 1
          %s442 = smul.addr %s441, 8
          %s443 = scalar_lea.vmem [#allocation8], %s442
          %445 = dma.done %s440, 128
        $region56: #{tpu_custom_call.1} parent=51 // pred_fallthru
          _
      $region52: #{tpu_custom_call.1} parent=5 // pred_fallthru
        _
    $region6: #{tpu_custom_call.1} parent=1 // loop_footer
      %s21 = sadd.s32 1, %s17
    $region7: #{tpu_custom_call.1} parent=1 // loop_footer_branch
      %16 = sbr.rel target = $region3
    $region8: #{tpu_custom_call.1} parent=1 // loop_exit
      _
    %446 = vsyncpa [#allocation4], 1
    %s447 = scalar_lea.sflag [#allocation4], 1
    %448 = vsyncpa %s447, 1
    %449 = vsyncpa [#allocation7], 1
    %s450 = scalar_lea.sflag [#allocation7], 1
    %451 = vsyncpa %s450, 1
    %452 = vsyncpa [#allocation5], 1
    %s453 = scalar_lea.sflag [#allocation5], 1
    %454 = vsyncpa %s453, 1

</llo_original>
